<compile_context>
chip_gen: v5e
topology: v5e:2x2
jax: 0.10.0
libtpu: 0.0.40
codegen_flags: <defaults>
</compile_context>

<pallas_src>
import jax
import jax.numpy as jnp
from jax.experimental import pallas as pl
from jax.experimental.pallas import tpu as pltpu

# logical dims from the PyTorch module
IN_F = 3
HID_F = 3
OUT_F = 1

TB_DEFAULT = 8192  # batch tile = lanes per grid step; must be a multiple of 128


def _round_up(n, m):
    return ((n + m - 1) // m) * m


def _mlp_kernel(p_ref, xt_ref, o_ref):
    # p_ref:  SMEM (16,) f32 = [w1[0,:], w1[1,:], w1[2,:], b1[0:3], w2[0,0:3], b2]
    # xt_ref: VMEM (IN_F, TB)  transposed input tile (features on sublanes, batch on lanes)
    # o_ref:  VMEM (1, TB)     lane-dense output tile
    x0 = xt_ref[0:1, :]
    x1 = xt_ref[1:2, :]
    x2 = xt_ref[2:3, :]

    acc = None
    for j in range(HID_F):
        # fc1 row j:  h_j = relu(w1[j,0]*x0 + w1[j,1]*x1 + w1[j,2]*x2 + b1[j])
        h = (x0 * p_ref[3 * j + 0]
             + x1 * p_ref[3 * j + 1]
             + x2 * p_ref[3 * j + 2]
             + p_ref[9 + j])
        h = jnp.maximum(h, 0.0)
        # fc2 contribution: w2[0, j] * h_j
        t = h * p_ref[12 + j]
        acc = t if acc is None else acc + t

    o_ref[...] = acc + p_ref[15]  # + b2


def make_neural_net_forward(w1, b1, w2, b2, tb=TB_DEFAULT):
    """Packs the nn.Linear parameters once into a (16,) SMEM vector and returns
    a jitted forward fn mapping (B, 3) -> (B, 1).

    Layouts follow nn.Linear conventions: w1 (3, 3) = (out, in), b1 (3,),
    w2 (1, 3), b2 (1,).
    """
    assert tb % 128 == 0
    params = jnp.concatenate([
        jnp.asarray(w1, jnp.float32).reshape(-1),   # w1[j, k] at index 3*j + k
        jnp.asarray(b1, jnp.float32).reshape(-1),   # b1[j]    at index 9 + j
        jnp.asarray(w2, jnp.float32).reshape(-1),   # w2[0, j] at index 12 + j
        jnp.asarray(b2, jnp.float32).reshape(-1),   # b2       at index 15
    ])  # (16,) f32

    @jax.jit
    def forward(x):
        B = x.shape[0]
        TB = min(tb, _round_up(B, 128))      # lane tile, multiple of 128
        n_tiles = pl.cdiv(B, TB)             # ragged last tile handled by Pallas

        # Lane-dense layout plumbing only (no zero-pad pass over the batch).
        xt = jnp.transpose(x.astype(jnp.float32))            # (IN_F, B)

        out = pl.pallas_call(
            _mlp_kernel,
            out_shape=jax.ShapeDtypeStruct((1, B), jnp.float32),
            grid=(n_tiles,),
            in_specs=[
                # 16 parameter scalars -> SMEM (no VMEM weight slabs / DMA streams)
                pl.BlockSpec(memory_space=pltpu.MemorySpace.SMEM),
                # x tile: features on sublanes (full dim = 3), batch on lanes
                pl.BlockSpec((IN_F, TB), lambda i: (0, i)),
            ],
            # lane-dense output slab, one (1, TB) block per grid step
            out_specs=pl.BlockSpec((1, TB), lambda i: (0, i)),
            compiler_params=pltpu.CompilerParams(
                dimension_semantics=("parallel",)),           # megacore-friendly on v7x
        )(params, xt)

        return out.reshape(B, OUT_F)   # (B, 1)

    return forward


def _init_params(key):
    """Deterministic init mimicking nn.Linear default (uniform +/- 1/sqrt(fan_in))."""
    k1, k2, k3, k4 = jax.random.split(key, 4)
    bound1 = 1.0 / jnp.sqrt(jnp.float32(IN_F))
    bound2 = 1.0 / jnp.sqrt(jnp.float32(HID_F))
    w1 = jax.random.uniform(k1, (HID_F, IN_F), jnp.float32, -bound1, bound1)
    b1 = jax.random.uniform(k2, (HID_F,), jnp.float32, -bound1, bound1)
    w2 = jax.random.uniform(k3, (OUT_F, HID_F), jnp.float32, -bound2, bound2)
    b2 = jax.random.uniform(k4, (OUT_F,), jnp.float32, -bound2, bound2)
    return w1, b1, w2, b2


def _reference(x, w1, b1, w2, b2):
    return jnp.maximum(x @ w1.T + b1, 0.0) @ w2.T + b2


if __name__ == "__main__":
    key = jax.random.PRNGKey(0)
    kx, kx2, kp = jax.random.split(key, 3)

    w1, b1, w2, b2 = _init_params(kp)

    # Small case (batch=2): single grid step, ragged tile (block > array).
    B = 2
    x = jax.random.normal(kx, (B, IN_F), jnp.float32)
    forward = make_neural_net_forward(w1, b1, w2, b2)
    out = jax.block_until_ready(forward(x))
    ref = _reference(x, w1, b1, w2, b2)
    assert out.shape == (B, OUT_F)
    assert jnp.allclose(out, ref, atol=1e-5, rtol=1e-5)

    # Multi-tile case: exercises the batch grid + ragged last tile (no padding).
    B2 = 300
    x2 = jax.random.normal(kx2, (B2, IN_F), jnp.float32)
    forward_small_tiles = make_neural_net_forward(w1, b1, w2, b2, tb=128)
    out2 = jax.block_until_ready(forward_small_tiles(x2))
    ref2 = _reference(x2, w1, b1, w2, b2)
    assert out2.shape == (B2, OUT_F)
    assert jnp.allclose(out2, ref2, atol=1e-5, rtol=1e-5)

    print("KERNEL_OK")
</pallas_src>

<mosaic_0001>
module attributes {stable_mosaic.version = 11 : i64} {
  func.func @_mlp_kernel(%arg0: i32, %arg1: memref<16xf32, #tpu.memory_space<smem>>, %arg2: memref<3x128xf32, #tpu.memory_space<vmem>>, %arg3: memref<1x128xf32, #tpu.memory_space<vmem>>) attributes {dimension_semantics = [#tpu.dimension_semantics<parallel>], iteration_bounds = array<i64: 1>, scalar_prefetch = 0 : i64, scratch_operands = 0 : i64, tpu.core_type = #tpu.core_type<tc>, window_params = [{transform_indices = @transform_0, window_bounds = array<i64: 16>}, {transform_indices = @transform_1, window_bounds = array<i64: 3, 128>}, {transform_indices = @transform_2, window_bounds = array<i64: 1, 128>}]} {
    %c0 = arith.constant 0 : index
    %c0_0 = arith.constant 0 : index
    %0 = vector.load %arg2[%c0, %c0_0] : memref<3x128xf32, #tpu.memory_space<vmem>>, vector<1x128xf32>
    %c1 = arith.constant 1 : index
    %c0_1 = arith.constant 0 : index
    %1 = vector.load %arg2[%c1, %c0_1] : memref<3x128xf32, #tpu.memory_space<vmem>>, vector<1x128xf32>
    %c2 = arith.constant 2 : index
    %c0_2 = arith.constant 0 : index
    %2 = vector.load %arg2[%c2, %c0_2] : memref<3x128xf32, #tpu.memory_space<vmem>>, vector<1x128xf32>
    %c0_3 = arith.constant 0 : index
    %3 = memref.load %arg1[%c0_3] : memref<16xf32, #tpu.memory_space<smem>>
    %4 = vector.broadcast %3 : f32 to vector<1x128xf32>
    %5 = arith.mulf %0, %4 : vector<1x128xf32>
    %c1_4 = arith.constant 1 : index
    %6 = memref.load %arg1[%c1_4] : memref<16xf32, #tpu.memory_space<smem>>
    %7 = vector.broadcast %6 : f32 to vector<1x128xf32>
    %8 = arith.mulf %1, %7 : vector<1x128xf32>
    %9 = arith.addf %5, %8 : vector<1x128xf32>
    %c2_5 = arith.constant 2 : index
    %10 = memref.load %arg1[%c2_5] : memref<16xf32, #tpu.memory_space<smem>>
    %11 = vector.broadcast %10 : f32 to vector<1x128xf32>
    %12 = arith.mulf %2, %11 : vector<1x128xf32>
    %13 = arith.addf %9, %12 : vector<1x128xf32>
    %c9 = arith.constant 9 : index
    %14 = memref.load %arg1[%c9] : memref<16xf32, #tpu.memory_space<smem>>
    %15 = vector.broadcast %14 : f32 to vector<1x128xf32>
    %16 = arith.addf %13, %15 : vector<1x128xf32>
    %cst = arith.constant 0.000000e+00 : f32
    %17 = vector.broadcast %cst : f32 to vector<1x128xf32>
    %18 = arith.maximumf %16, %17 : vector<1x128xf32>
    %c12 = arith.constant 12 : index
    %19 = memref.load %arg1[%c12] : memref<16xf32, #tpu.memory_space<smem>>
    %20 = vector.broadcast %19 : f32 to vector<1x128xf32>
    %21 = arith.mulf %18, %20 : vector<1x128xf32>
    %c3 = arith.constant 3 : index
    %22 = memref.load %arg1[%c3] : memref<16xf32, #tpu.memory_space<smem>>
    %23 = vector.broadcast %22 : f32 to vector<1x128xf32>
    %24 = arith.mulf %0, %23 : vector<1x128xf32>
    %c4 = arith.constant 4 : index
    %25 = memref.load %arg1[%c4] : memref<16xf32, #tpu.memory_space<smem>>
    %26 = vector.broadcast %25 : f32 to vector<1x128xf32>
    %27 = arith.mulf %1, %26 : vector<1x128xf32>
    %28 = arith.addf %24, %27 : vector<1x128xf32>
    %c5 = arith.constant 5 : index
    %29 = memref.load %arg1[%c5] : memref<16xf32, #tpu.memory_space<smem>>
    %30 = vector.broadcast %29 : f32 to vector<1x128xf32>
    %31 = arith.mulf %2, %30 : vector<1x128xf32>
    %32 = arith.addf %28, %31 : vector<1x128xf32>
    %c10 = arith.constant 10 : index
    %33 = memref.load %arg1[%c10] : memref<16xf32, #tpu.memory_space<smem>>
    %34 = vector.broadcast %33 : f32 to vector<1x128xf32>
    %35 = arith.addf %32, %34 : vector<1x128xf32>
    %cst_6 = arith.constant 0.000000e+00 : f32
    %36 = vector.broadcast %cst_6 : f32 to vector<1x128xf32>
    %37 = arith.maximumf %35, %36 : vector<1x128xf32>
    %c13 = arith.constant 13 : index
    %38 = memref.load %arg1[%c13] : memref<16xf32, #tpu.memory_space<smem>>
    %39 = vector.broadcast %38 : f32 to vector<1x128xf32>
    %40 = arith.mulf %37, %39 : vector<1x128xf32>
    %41 = arith.addf %21, %40 : vector<1x128xf32>
    %c6 = arith.constant 6 : index
    %42 = memref.load %arg1[%c6] : memref<16xf32, #tpu.memory_space<smem>>
    %43 = vector.broadcast %42 : f32 to vector<1x128xf32>
    %44 = arith.mulf %0, %43 : vector<1x128xf32>
    %c7 = arith.constant 7 : index
    %45 = memref.load %arg1[%c7] : memref<16xf32, #tpu.memory_space<smem>>
    %46 = vector.broadcast %45 : f32 to vector<1x128xf32>
    %47 = arith.mulf %1, %46 : vector<1x128xf32>
    %48 = arith.addf %44, %47 : vector<1x128xf32>
    %c8 = arith.constant 8 : index
    %49 = memref.load %arg1[%c8] : memref<16xf32, #tpu.memory_space<smem>>
    %50 = vector.broadcast %49 : f32 to vector<1x128xf32>
    %51 = arith.mulf %2, %50 : vector<1x128xf32>
    %52 = arith.addf %48, %51 : vector<1x128xf32>
    %c11 = arith.constant 11 : index
    %53 = memref.load %arg1[%c11] : memref<16xf32, #tpu.memory_space<smem>>
    %54 = vector.broadcast %53 : f32 to vector<1x128xf32>
    %55 = arith.addf %52, %54 : vector<1x128xf32>
    %cst_7 = arith.constant 0.000000e+00 : f32
    %56 = vector.broadcast %cst_7 : f32 to vector<1x128xf32>
    %57 = arith.maximumf %55, %56 : vector<1x128xf32>
    %c14 = arith.constant 14 : index
    %58 = memref.load %arg1[%c14] : memref<16xf32, #tpu.memory_space<smem>>
    %59 = vector.broadcast %58 : f32 to vector<1x128xf32>
    %60 = arith.mulf %57, %59 : vector<1x128xf32>
    %61 = arith.addf %41, %60 : vector<1x128xf32>
    %c15 = arith.constant 15 : index
    %62 = memref.load %arg1[%c15] : memref<16xf32, #tpu.memory_space<smem>>
    %63 = vector.broadcast %62 : f32 to vector<1x128xf32>
    %64 = arith.addf %61, %63 : vector<1x128xf32>
    %c0_8 = arith.constant 0 : index
    %c0_9 = arith.constant 0 : index
    %65 = vector.load %arg3[%c0_8, %c0_9] : memref<1x128xf32, #tpu.memory_space<vmem>>, vector<1x128xf32>
    tpu.vector_store %arg3[%c0_8, %c0_9], %64 {strides = array<i32>} : memref<1x128xf32, #tpu.memory_space<vmem>>, vector<1x128xf32>,
    return
  }
  func.func @transform_0(%arg0: i32) -> i32 {
    %c0_i32 = arith.constant 0 : i32
    %c0_i32_0 = arith.constant 0 : i32
    return %c0_i32 : i32
  }
  func.func @transform_1(%arg0: i32) -> (i32, i32) {
    %c0_i32 = arith.constant 0 : i32
    %c0_i32_0 = arith.constant 0 : i32
    return %c0_i32, %arg0 : i32, i32
  }
  func.func @transform_2(%arg0: i32) -> (i32, i32) {
    %c0_i32 = arith.constant 0 : i32
    %c0_i32_0 = arith.constant 0 : i32
    return %c0_i32, %arg0 : i32, i32
  }
}

</mosaic_0001>

<llo_original>
// kernel: forward.1
$region0: #{forward.1}
  #allocation0 [shape = 'u32[]', space=smem, size = 0x4, offset = 0x4, fixed_abs, tag = 'smem constant byte address 0x4 - core index']
  #allocation1 [shape = 'u32[72,128]{1,0:T(1,128)}', space=vmem, size = 0x9000, scoped, tag = 'internal scratch']
  %s0 = inlined_call_operand.vmem [shape: f32[16], index: 0, kind: input, shape index: {}]
  %s1 = inlined_call_operand.vmem [shape: f32[3,2], index: 1, kind: input, shape index: {}]
  %s2 = inlined_call_operand.hbm [shape: f32[1,2], index: 2, kind: output, shape index: {}]
  %s3 = sld [smem:[#allocation0]]
  $region22: #{forward.1} parent=0
    _
  %s5 = ssub.s32 1, %s3
  %s6 = scalar_select 0, %s5, %s3
  $region1: #{forward.1} parent=0
    #allocation2 [shape = 'u8[512]{0}', space=smem, size = 0x200, scoped, tag = 'input window, operand 0, single buffered']
    #allocation3 [shape = 's32[1]{0}', space=sflag, size = 0x4, scoped, tag = 'scoped memory for forward.1']
    #allocation4 [shape = 's32[1]{0}', space=sflag, size = 0x4, scoped, tag = 'scoped memory for forward.1']
    #allocation5 [shape = 'u8[512]{0}', space=vmem, size = 0x400, scoped, tag = 'output window, operand 0, single buffered']
    %7 = vsyncpa [#allocation4], 0
    %8 = vsyncpa [#allocation3], 0
    // Predicated region
    $region2: #{forward.1} parent=1 // pred_check
      _
    $region3: #{forward.1} parent=1 // pred_check_branch
      %10 = sbr.rel (0) target = $region5
    $region4: #{forward.1} parent=1 // pred_region
      %12 = vsyncadd [#allocation4], 0
      %s14 = sshll.u32 %s0, 4
      %s15 = int_to_ptr.vmem [resolvable:$true] %s14
      %17 = dma.vmem_to_smem %s15, 16, [#allocation2], [#allocation4]
    $region5: #{forward.1} parent=1 // pred_fallthru
      _
    // Predicated region
    $region6: #{forward.1} parent=1 // pred_check
      _
    $region7: #{forward.1} parent=1 // pred_check_branch
      %19 = sbr.rel (0) target = $region9
    $region8: #{forward.1} parent=1 // pred_region
      _
    $region9: #{forward.1} parent=1 // pred_fallthru
      _
    // Predicated region
    $region10: #{forward.1} parent=1 // pred_check
      _
    $region11: #{forward.1} parent=1 // pred_check_branch
      %21 = sbr.rel (0) target = $region13
    $region12: #{forward.1} parent=1 // pred_region
      %23 = dma.done [#allocation4], 16
    $region13: #{forward.1} parent=1 // pred_fallthru
      _
    %24 = sfence
    %v25 = vld [vmem:[%s1] sm:$0x1]
    %v26 = vld [vmem:[%s1 + $0x1] sm:$0x1]
    %v27 = vld [vmem:[%s1 + $0x2] sm:$0x1]
    %s28 = sld [smem:[#allocation2]]
    %v29 = vstv %s28
    %v30 = vmul.f32 %v25, %v29
    %s31 = sld [smem:[#allocation2 + $0x1]]
    %v32 = vstv %s31
    %v33 = vmul.f32 %v26, %v32
    %v34 = vadd.f32 %v30, %v33
    %s35 = sld [smem:[#allocation2 + $0x2]]
    %v36 = vstv %s35
    %v37 = vmul.f32 %v27, %v36
    %v38 = vadd.f32 %v34, %v37
    %s39 = sld [smem:[#allocation2 + $0x9]]
    %v40 = vstv %s39
    %v41 = vadd.f32 %v38, %v40
    %v42 = vmax.f32 %v41, 0.0
    %s43 = sld [smem:[#allocation2 + $0xc]]
    %v44 = vstv %s43
    %v45 = vmul.f32 %v42, %v44
    %s46 = sld [smem:[#allocation2 + $0x3]]
    %v47 = vstv %s46
    %v48 = vmul.f32 %v25, %v47
    %s49 = sld [smem:[#allocation2 + $0x4]]
    %v50 = vstv %s49
    %v51 = vmul.f32 %v26, %v50
    %v52 = vadd.f32 %v48, %v51
    %s53 = sld [smem:[#allocation2 + $0x5]]
    %v54 = vstv %s53
    %v55 = vmul.f32 %v27, %v54
    %v56 = vadd.f32 %v52, %v55
    %s57 = sld [smem:[#allocation2 + $0xa]]
    %v58 = vstv %s57
    %v59 = vadd.f32 %v56, %v58
    %v60 = vmax.f32 %v59, 0.0
    %s61 = sld [smem:[#allocation2 + $0xd]]
    %v62 = vstv %s61
    %v63 = vmul.f32 %v60, %v62
    %v64 = vadd.f32 %v45, %v63
    %s65 = sld [smem:[#allocation2 + $0x6]]
    %v66 = vstv %s65
    %v67 = vmul.f32 %v25, %v66
    %s68 = sld [smem:[#allocation2 + $0x7]]
    %v69 = vstv %s68
    %v70 = vmul.f32 %v26, %v69
    %v71 = vadd.f32 %v67, %v70
    %s72 = sld [smem:[#allocation2 + $0x8]]
    %v73 = vstv %s72
    %v74 = vmul.f32 %v27, %v73
    %v75 = vadd.f32 %v71, %v74
    %s76 = sld [smem:[#allocation2 + $0xb]]
    %v77 = vstv %s76
    %v78 = vadd.f32 %v75, %v77
    %v79 = vmax.f32 %v78, 0.0
    %s80 = sld [smem:[#allocation2 + $0xe]]
    %v81 = vstv %s80
    %v82 = vmul.f32 %v79, %v81
    %v83 = vadd.f32 %v64, %v82
    %s84 = sld [smem:[#allocation2 + $0xf]]
    %v85 = vstv %s84
    %v86 = vadd.f32 %v83, %v85
    %87 = vst [vmem:[#allocation5] sm:$0x1] %v86
    // Predicated region
    $region14: #{forward.1} parent=1 // pred_check
      _
    $region15: #{forward.1} parent=1 // pred_check_branch
      %89 = sbr.rel (0) target = $region17
    $region16: #{forward.1} parent=1 // pred_region
      %91 = vsyncadd [#allocation3], 0
      %s93 = sshll.u32 [#allocation5], 4
      %s94 = int_to_ptr.vmem [resolvable:$true] %s93
      %s95 = sshll.u32 %s2, 4
      %s96 = int_to_ptr.hbm [resolvable:$true] %s95
      %98 = dma.vmem_to_hbm [thread:$0]  %s94, 16, %s96, [#allocation3]
    $region17: #{forward.1} parent=1 // pred_fallthru
      _
    // Predicated region
    $region18: #{forward.1} parent=1 // pred_check
      _
    $region19: #{forward.1} parent=1 // pred_check_branch
      %100 = sbr.rel (0) target = $region21
    $region20: #{forward.1} parent=1 // pred_region
      %102 = dma.done [#allocation3], 16
    $region21: #{forward.1} parent=1 // pred_fallthru
      _
    %103 = vsyncpa [#allocation3], 1
    %104 = vsyncpa [#allocation4], 1

</llo_original>
